<compile_context>
chip_gen: v7x
topology: tpu7x:2x2x1
jax: 0.10.0
libtpu: 0.0.40
codegen_flags: <defaults>
</compile_context>

<pallas_src>
import jax
import jax.numpy as jnp
from jax.experimental import pallas as pl
from jax.experimental.pallas import tpu as pltpu

LANE = 128


def _round_up(x, m):
    return -(-x // m) * m


# ----------------------------------------------------------------------------- kernel

def _make_fused_mlp_kernel(layer_meta):
    """Build the fused-MLP kernel body.

    layer_meta: static tuple of (w_row_offset, k_pad, n_pad, bias_row, post_row, apply_relu).
      * Weight of layer i lives at w_ref[w_row_offset : w_row_offset + k_pad, :n_pad] (bf16).
      * Bias lives at aff_ref[bias_row, :n_pad] (f32); if post_row is not None the post-ReLU BN
        affine (scale, shift) lives at rows post_row and post_row + 1.
    """

    def kernel(x_ref, w_ref, aff_ref, o_ref):
        h = x_ref[...]                                           # f32 (Bblk, in_dim_pad)
        for (w_off, k_pad, n_pad, bias_row, post_row, apply_relu) in layer_meta:
            w = w_ref[w_off:w_off + k_pad, 0:n_pad]              # static slice, VMEM-resident bf16
            # bf16 MXU matmul with f32 accumulation; bias / ReLU / affine epilogue in f32.
            y = jnp.dot(h.astype(w_ref.dtype), w, preferred_element_type=jnp.float32)
            y = y + aff_ref[bias_row:bias_row + 1, 0:n_pad]
            if apply_relu:
                y = jnp.maximum(y, 0.0)
            if post_row is not None:                             # bn==1 on a hidden layer (post-ReLU BN)
                y = (y * aff_ref[post_row:post_row + 1, 0:n_pad]
                     + aff_ref[post_row + 1:post_row + 2, 0:n_pad])
            h = y
        o_ref[...] = h.astype(o_ref.dtype)

    return kernel


def fused_mlp_forward(x_flat, w_packed, aff_packed, layer_meta,
                      in_dim_pad, out_dim_pad, out_dim, block_rows=1024):
    """Run the entire MLP in one Pallas call with a pipelined batch grid.

    x_flat: (B, in_dim) float32. Returns (B, out_dim) float32.
    """
    B, in_dim = x_flat.shape

    # Pad batch to a multiple of 16 (bf16 LHS sublane packing), then to a multiple of the block.
    bp16 = _round_up(max(B, 16), 16)
    bblk = min(block_rows, bp16)
    bp = _round_up(bp16, bblk)
    x_flat = jnp.pad(x_flat, ((0, bp - B), (0, in_dim_pad - in_dim)))

    flops = 2 * bp * sum(k * n for (_, k, n, _, _, _) in layer_meta)
    bytes_accessed = (bp * (in_dim_pad + out_dim_pad) * 4
                      + w_packed.size * w_packed.dtype.itemsize
                      + aff_packed.size * aff_packed.dtype.itemsize)

    out = pl.pallas_call(
        _make_fused_mlp_kernel(layer_meta),
        out_shape=jax.ShapeDtypeStruct((bp, out_dim_pad), jnp.float32),
        grid=(bp // bblk,),
        in_specs=[
            # Activations: pipelined (double-buffered) batch blocks.
            pl.BlockSpec((bblk, in_dim_pad), lambda i: (i, 0)),
            # Packed weights / biases: full array, constant index map -> VMEM-resident across steps.
            pl.BlockSpec(w_packed.shape, lambda i: (0, 0)),
            pl.BlockSpec(aff_packed.shape, lambda i: (0, 0)),
        ],
        out_specs=pl.BlockSpec((bblk, out_dim_pad), lambda i: (i, 0)),
        compiler_params=pltpu.CompilerParams(
            dimension_semantics=("parallel",),        # v7x: shard batch blocks across both TCs
            vmem_limit_bytes=32 * 1024 * 1024,        # safe on v5e/v6e/v7x for <=1024-row blocks
        ),
        cost_estimate=pl.CostEstimate(flops=flops, transcendentals=0,
                                      bytes_accessed=bytes_accessed),
    )(x_flat, w_packed, aff_packed)
    return out[:B, :out_dim]


# ----------------------------------------------------------------------------- model

class OceanCurrentMLPPallas:
    """Parameter container + forward pass mirroring the PyTorch OceanCurrentMLP (eval mode)."""

    def __init__(self, key, input_dim, output_layers_dims, batch_norm_layers,
                 dropout_layers, output_shape, bn_eps=1e-5, weight_dtype=jnp.bfloat16,
                 block_rows=1024):
        assert len(output_layers_dims) == len(batch_norm_layers) == len(dropout_layers)
        self.output_shape = tuple(output_shape)
        self.block_rows = block_rows
        n = len(output_layers_dims)

        # ---- build unpadded, BN-folded per-layer params (also used by the JAX reference) ----
        layers = []
        for i in range(n):
            inp = input_dim if i == 0 else output_layers_dims[i - 1]
            out = output_layers_dims[i]
            key, kw, kb, kg, kbeta = jax.random.split(key, 5)

            # nn.Linear default init: U(-1/sqrt(in), 1/sqrt(in)) for weight and bias.
            bound = 1.0 / float(inp) ** 0.5
            w = jax.random.uniform(kw, (inp, out), jnp.float32, -bound, bound)
            b = jax.random.uniform(kb, (1, out), jnp.float32, -bound, bound)

            bn = batch_norm_layers[i]
            apply_relu = (i + 1 < n)
            post_scale = post_shift = None
            if bn in (0, 1):
                # Deterministic non-trivial BN affine; running_mean=0, running_var=1 (fresh module).
                gamma = 1.0 + 0.1 * jax.random.normal(kg, (1, out), jnp.float32)
                beta = 0.1 * jax.random.normal(kbeta, (1, out), jnp.float32)
                running_mean = jnp.zeros((1, out), jnp.float32)
                running_var = jnp.ones((1, out), jnp.float32)
                scale = gamma / jnp.sqrt(running_var + bn_eps)
                shift = beta - running_mean * scale
                if bn == 0 or not apply_relu:
                    # BN sits directly after the Linear (no ReLU in between) -> exact fold into W, b.
                    w = w * scale
                    b = b * scale + shift
                else:
                    # bn == 1 on a hidden layer: Linear -> ReLU -> Dropout -> BN (post-ReLU affine).
                    post_scale, post_shift = scale, shift

            # dropout_layers[i] ignored: identity in eval mode.
            layers.append(dict(w=w.astype(weight_dtype), b=b,
                               post_scale=post_scale, post_shift=post_shift,
                               apply_relu=apply_relu))
        self.layers = layers

        # ---- pack & lane-pad parameters for the kernel ----
        padded_dims = [_round_up(input_dim, LANE)] + [_round_up(d, LANE) for d in output_layers_dims]
        w_max = max(padded_dims[1:])

        w_blocks, aff_rows, meta = [], [], []
        w_off = 0
        for i, lyr in enumerate(layers):
            k, nout = lyr["w"].shape
            k_pad, n_pad = padded_dims[i], padded_dims[i + 1]
            wp = jnp.zeros((k_pad, w_max), weight_dtype).at[:k, :nout].set(lyr["w"])
            w_blocks.append(wp)

            bias_row = len(aff_rows)
            aff_rows.append(jnp.zeros((w_max,), jnp.float32).at[:nout].set(lyr["b"][0]))
            post_row = None
            if lyr["post_scale"] is not None:
                post_row = len(aff_rows)
                aff_rows.append(jnp.zeros((w_max,), jnp.float32).at[:nout].set(lyr["post_scale"][0]))
                aff_rows.append(jnp.zeros((w_max,), jnp.float32).at[:nout].set(lyr["post_shift"][0]))

            meta.append((w_off, k_pad, n_pad, bias_row, post_row, lyr["apply_relu"]))
            w_off += k_pad

        n_aff_pad = _round_up(len(aff_rows), 8)
        aff_rows += [jnp.zeros((w_max,), jnp.float32)] * (n_aff_pad - len(aff_rows))

        self.w_packed = jnp.concatenate(w_blocks, axis=0)      # (sum k_pad, w_max) bf16
        self.aff_packed = jnp.stack(aff_rows, axis=0)          # (n_aff_pad, w_max) f32
        self.layer_meta = tuple(meta)
        self.input_dim = input_dim
        self.in_dim_pad = padded_dims[0]
        self.out_dim = output_layers_dims[-1]
        self.out_dim_pad = padded_dims[-1]

    def __call__(self, x):
        B = x.shape[0]
        h = x.reshape(B, -1).astype(jnp.float32)               # nn.Flatten()
        out = fused_mlp_forward(h, self.w_packed, self.aff_packed, self.layer_meta,
                                self.in_dim_pad, self.out_dim_pad, self.out_dim,
                                block_rows=self.block_rows)
        return out.reshape((B,) + self.output_shape)           # nn.Unflatten(1, output_shape)

    def reference(self, x):
        """Plain-JAX reference with identical math (bf16 weights, f32 accumulation)."""
        B = x.shape[0]
        h = x.reshape(B, -1).astype(jnp.float32)
        for lyr in self.layers:
            y = jnp.dot(h.astype(lyr["w"].dtype), lyr["w"],
                        preferred_element_type=jnp.float32) + lyr["b"]
            if lyr["apply_relu"]:
                y = jnp.maximum(y, 0.0)
            if lyr["post_scale"] is not None:
                y = y * lyr["post_scale"] + lyr["post_shift"]
            h = y
        return h.reshape((B,) + self.output_shape)


# ----------------------------------------------------------------------------- main

if __name__ == "__main__":
    key = jax.random.PRNGKey(0)
    key, kx, kp = jax.random.split(key, 3)

    # Example configuration consistent with the module's constructor:
    #   input x: [batch=2, C=4, H=16, W=16] -> Flatten -> input_dim = 4*16*16 = 1024
    #   hidden dims [32, 32], output dim 2*8*8 = 128, Unflatten to (2, 8, 8)
    B, C, H, W = 2, 4, 16, 16
    input_dim = C * H * W
    output_layers_dims = [32, 32, 2 * 8 * 8]
    batch_norm_layers = [0, 1, -1]     # 0: BN before ReLU; 1: BN after dropout; -1: none
    dropout_layers = [0.0, 0.2, 0.0]   # identity in eval mode
    output_shape = (2, 8, 8)

    model = OceanCurrentMLPPallas(kp, input_dim, output_layers_dims,
                                  batch_norm_layers, dropout_layers, output_shape)

    x = jax.random.normal(kx, (B, C, H, W), jnp.float32)

    out = model(x)
    out = jax.block_until_ready(out)

    ref = model.reference(x)
    assert out.shape == (B,) + tuple(output_shape), out.shape
    assert jnp.allclose(out, ref, atol=2e-3, rtol=2e-3), "Pallas output mismatch vs reference"

    print("KERNEL_OK")
</pallas_src>

<mosaic_0001>
module attributes {stable_mosaic.version = 11 : i64} {
  func.func @kernel(%arg0: i32, %arg1: memref<16x1024xf32, #tpu.memory_space<vmem>>, %arg2: memref<1280x128xbf16, #tpu.memory_space<vmem>>, %arg3: memref<8x128xf32, #tpu.memory_space<vmem>>, %arg4: memref<16x128xf32, #tpu.memory_space<vmem>>) attributes {dimension_semantics = [#tpu.dimension_semantics<parallel>], iteration_bounds = array<i64: 1>, scalar_prefetch = 0 : i64, scratch_operands = 0 : i64, tpu.core_type = #tpu.core_type<tc>, window_params = [{transform_indices = @transform_0, window_bounds = array<i64: 16, 1024>}, {pipeline_mode = #tpu.pipeline_mode<synchronous>, transform_indices = @transform_1, window_bounds = array<i64: 1280, 128>}, {pipeline_mode = #tpu.pipeline_mode<synchronous>, transform_indices = @transform_2, window_bounds = array<i64: 8, 128>}, {transform_indices = @transform_3, window_bounds = array<i64: 16, 128>}]} {
    %c0 = arith.constant 0 : index
    %c0_0 = arith.constant 0 : index
    %0 = vector.load %arg1[%c0, %c0_0] : memref<16x1024xf32, #tpu.memory_space<vmem>>, vector<16x1024xf32>
    %c0_1 = arith.constant 0 : index
    %c0_2 = arith.constant 0 : index
    %1 = vector.load %arg2[%c0_1, %c0_2] : memref<1280x128xbf16, #tpu.memory_space<vmem>>, vector<1024x128xbf16>
    %2 = arith.truncf %0 : vector<16x1024xf32> to vector<16x1024xbf16>
    %cst = arith.constant dense<0.000000e+00> : vector<16x128xf32>
    %3 = tpu.matmul %2, %1, %cst {dimension_numbers = #tpu.dot_dimension_numbers<[1], [0], [0], [1], [0, 0, 1, 1], [], []>} : vector<16x1024xbf16>, vector<1024x128xbf16>, vector<16x128xf32> -> vector<16x128xf32>
    %c0_3 = arith.constant 0 : index
    %c0_4 = arith.constant 0 : index
    %4 = vector.load %arg3[%c0_3, %c0_4] : memref<8x128xf32, #tpu.memory_space<vmem>>, vector<1x128xf32>
    %5 = vector.broadcast %4 : vector<1x128xf32> to vector<16x128xf32>
    %6 = arith.addf %3, %5 : vector<16x128xf32>
    %cst_5 = arith.constant 0.000000e+00 : f32
    %7 = vector.broadcast %cst_5 : f32 to vector<16x128xf32>
    %8 = arith.maximumf %6, %7 : vector<16x128xf32>
    %c1024 = arith.constant 1024 : index
    %c0_6 = arith.constant 0 : index
    %9 = vector.load %arg2[%c1024, %c0_6] : memref<1280x128xbf16, #tpu.memory_space<vmem>>, vector<128x128xbf16>
    %10 = arith.truncf %8 : vector<16x128xf32> to vector<16x128xbf16>
    %cst_7 = arith.constant dense<0.000000e+00> : vector<16x128xf32>
    %11 = tpu.matmul %10, %9, %cst_7 {dimension_numbers = #tpu.dot_dimension_numbers<[1], [0], [0], [1], [0, 0, 1, 1], [], []>} : vector<16x128xbf16>, vector<128x128xbf16>, vector<16x128xf32> -> vector<16x128xf32>
    %c1 = arith.constant 1 : index
    %c0_8 = arith.constant 0 : index
    %12 = vector.load %arg3[%c1, %c0_8] : memref<8x128xf32, #tpu.memory_space<vmem>>, vector<1x128xf32>
    %13 = vector.broadcast %12 : vector<1x128xf32> to vector<16x128xf32>
    %14 = arith.addf %11, %13 : vector<16x128xf32>
    %cst_9 = arith.constant 0.000000e+00 : f32
    %15 = vector.broadcast %cst_9 : f32 to vector<16x128xf32>
    %16 = arith.maximumf %14, %15 : vector<16x128xf32>
    %c2 = arith.constant 2 : index
    %c0_10 = arith.constant 0 : index
    %17 = vector.load %arg3[%c2, %c0_10] : memref<8x128xf32, #tpu.memory_space<vmem>>, vector<1x128xf32>
    %18 = vector.broadcast %17 : vector<1x128xf32> to vector<16x128xf32>
    %19 = arith.mulf %16, %18 : vector<16x128xf32>
    %c3 = arith.constant 3 : index
    %c0_11 = arith.constant 0 : index
    %20 = vector.load %arg3[%c3, %c0_11] : memref<8x128xf32, #tpu.memory_space<vmem>>, vector<1x128xf32>
    %21 = vector.broadcast %20 : vector<1x128xf32> to vector<16x128xf32>
    %22 = arith.addf %19, %21 : vector<16x128xf32>
    %c1152 = arith.constant 1152 : index
    %c0_12 = arith.constant 0 : index
    %23 = vector.load %arg2[%c1152, %c0_12] : memref<1280x128xbf16, #tpu.memory_space<vmem>>, vector<128x128xbf16>
    %24 = arith.truncf %22 : vector<16x128xf32> to vector<16x128xbf16>
    %cst_13 = arith.constant dense<0.000000e+00> : vector<16x128xf32>
    %25 = tpu.matmul %24, %23, %cst_13 {dimension_numbers = #tpu.dot_dimension_numbers<[1], [0], [0], [1], [0, 0, 1, 1], [], []>} : vector<16x128xbf16>, vector<128x128xbf16>, vector<16x128xf32> -> vector<16x128xf32>
    %c4 = arith.constant 4 : index
    %c0_14 = arith.constant 0 : index
    %26 = vector.load %arg3[%c4, %c0_14] : memref<8x128xf32, #tpu.memory_space<vmem>>, vector<1x128xf32>
    %27 = vector.broadcast %26 : vector<1x128xf32> to vector<16x128xf32>
    %28 = arith.addf %25, %27 : vector<16x128xf32>
    %c0_15 = arith.constant 0 : index
    %c0_16 = arith.constant 0 : index
    %29 = vector.load %arg4[%c0_15, %c0_16] : memref<16x128xf32, #tpu.memory_space<vmem>>, vector<16x128xf32>
    tpu.vector_store %arg4[%c0_15, %c0_16], %28 {strides = array<i32>} : memref<16x128xf32, #tpu.memory_space<vmem>>, vector<16x128xf32>,
    return
  }
  func.func @transform_0(%arg0: i32) -> (i32, i32) {
    %c0_i32 = arith.constant 0 : i32
    %c0_i32_0 = arith.constant 0 : i32
    return %arg0, %c0_i32 : i32, i32
  }
  func.func @transform_1(%arg0: i32) -> (i32, i32) {
    %c0_i32 = arith.constant 0 : i32
    %c0_i32_0 = arith.constant 0 : i32
    %c0_i32_1 = arith.constant 0 : i32
    return %c0_i32, %c0_i32_0 : i32, i32
  }
  func.func @transform_2(%arg0: i32) -> (i32, i32) {
    %c0_i32 = arith.constant 0 : i32
    %c0_i32_0 = arith.constant 0 : i32
    %c0_i32_1 = arith.constant 0 : i32
    return %c0_i32, %c0_i32_0 : i32, i32
  }
  func.func @transform_3(%arg0: i32) -> (i32, i32) {
    %c0_i32 = arith.constant 0 : i32
    %c0_i32_0 = arith.constant 0 : i32
    return %arg0, %c0_i32 : i32, i32
  }
}

</mosaic_0001>

<llo_original>
// kernel: tpu_custom_call.1
$region0: #{tpu_custom_call.1}
  #allocation0 [shape = 'u32[]', space=smem, size = 0x4, offset = 0x4, fixed_abs, tag = 'smem constant byte address 0x4 - core index']
  #allocation1 [shape = 'u32[144,128]{1,0:T(1,128)}', space=vmem, size = 0x12000, scoped, tag = 'internal scratch']
  %s0 = inlined_call_operand.hbm [shape: f32[16,1024], index: 0, kind: input, shape index: {}]
  %s1 = inlined_call_operand.hbm [shape: bf16[1280,128], index: 1, kind: input, shape index: {}]
  %s2 = inlined_call_operand.hbm [shape: f32[8,128], index: 2, kind: input, shape index: {}]
  %s3 = inlined_call_operand.hbm [shape: f32[16,128], index: 3, kind: output, shape index: {}]
  %s4 = sld [smem:[#allocation0]]
  $region34: #{tpu_custom_call.1} parent=0
    _
  %s6 = ssub.s32 1, %s4
  %s7 = scalar_select 0, %s6, %s4
  $region1: #{tpu_custom_call.1} parent=0
    #allocation2 [shape = 'u8[65536]{0}', space=vmem, size = 0x10000, scoped, tag = 'input window, operand 0, single buffered']
    #allocation3 [shape = 's32[1]{0}', space=sflag, size = 0x4, scoped, tag = 'scoped memory for tpu_custom_call.1']
    #allocation4 [shape = 's32[1]{0}', space=sflag, size = 0x4, scoped, tag = 'scoped memory for tpu_custom_call.1']
    #allocation5 [shape = 'u8[327680]{0}', space=vmem, size = 0x50000, scoped, tag = 'input window, operand 1, single buffered']
    #allocation6 [shape = 's32[1]{0}', space=sflag, size = 0x4, scoped, tag = 'scoped memory for tpu_custom_call.1']
    #allocation7 [shape = 'u8[4096]{0}', space=vmem, size = 0x1000, scoped, tag = 'input window, operand 2, single buffered']
    #allocation8 [shape = 'u8[8192]{0}', space=vmem, size = 0x2000, scoped, tag = 'output window, operand 0, single buffered']
    %8 = vsyncpa [#allocation3], 0
    %9 = vsyncpa [#allocation6], 0
    %10 = vsyncpa [#allocation4], 0
    // Predicated region
    $region2: #{tpu_custom_call.1} parent=1 // pred_check
      _
    $region3: #{tpu_custom_call.1} parent=1 // pred_check_branch
      %12 = sbr.rel (0) target = $region5
    $region4: #{tpu_custom_call.1} parent=1 // pred_region
      %s14 = ssub.s32 2048, 2048
      %15 = vsyncadd [#allocation3], %s14
      %s16 = sshll.u32 [#allocation2], 4
      %s17 = int_to_ptr.vmem [resolvable:$true] %s16
      %22 = dma.hbm_to_vmem [thread:$0]  %s0, 2048, %s17, [#allocation3], 1024, 1024, 64
    $region5: #{tpu_custom_call.1} parent=1 // pred_fallthru
      _
    // Predicated region
    $region6: #{tpu_custom_call.1} parent=1 // pred_check
      _
    $region7: #{tpu_custom_call.1} parent=1 // pred_check_branch
      %24 = sbr.rel (0) target = $region9
    $region8: #{tpu_custom_call.1} parent=1 // pred_region
      %s26 = ssub.s32 10240, 10240
      %27 = vsyncadd [#allocation6], %s26
      %s28 = sshll.u32 [#allocation5], 4
      %s29 = int_to_ptr.vmem [resolvable:$true] %s28
      %34 = dma.hbm_to_vmem [thread:$0]  %s1, 10240, %s29, [#allocation6], 64, 64, 4
    $region9: #{tpu_custom_call.1} parent=1 // pred_fallthru
      _
    // Predicated region
    $region10: #{tpu_custom_call.1} parent=1 // pred_check
      _
    $region11: #{tpu_custom_call.1} parent=1 // pred_check_branch
      %36 = sbr.rel (0) target = $region13
    $region12: #{tpu_custom_call.1} parent=1 // pred_region
      %s38 = ssub.s32 128, 128
      %39 = vsyncadd [#allocation6], %s38
      %s41 = sshll.u32 [#allocation7], 4
      %s42 = int_to_ptr.vmem [resolvable:$true] %s41
      %44 = dma.hbm_to_vmem [thread:$0]  %s2, 128, %s42, [#allocation6]
    $region13: #{tpu_custom_call.1} parent=1 // pred_fallthru
      _
    // Predicated region
    $region14: #{tpu_custom_call.1} parent=1 // pred_check
      _
    $region15: #{tpu_custom_call.1} parent=1 // pred_check_branch
      %46 = sbr.rel (0) target = $region17
    $region16: #{tpu_custom_call.1} parent=1 // pred_region
      %47 = dma.done [#allocation3], 2048
    $region17: #{tpu_custom_call.1} parent=1 // pred_fallthru
      _
    // Predicated region
    $region18: #{tpu_custom_call.1} parent=1 // pred_check
      _
    $region19: #{tpu_custom_call.1} parent=1 // pred_check_branch
      %49 = sbr.rel (0) target = $region21
    $region20: #{tpu_custom_call.1} parent=1 // pred_region
      %50 = dma.done [#allocation6], 10240
    $region21: #{tpu_custom_call.1} parent=1 // pred_fallthru
      _
    // Predicated region
    $region22: #{tpu_custom_call.1} parent=1 // pred_check
      _
    $region23: #{tpu_custom_call.1} parent=1 // pred_check_branch
      %52 = sbr.rel (0) target = $region25
    $region24: #{tpu_custom_call.1} parent=1 // pred_region
      %53 = dma.done [#allocation6], 128
    $region25: #{tpu_custom_call.1} parent=1 // pred_fallthru
      _
    %v55 = vld [vmem:[#allocation2] sm:$0xff]
    %v56 = vld [vmem:[#allocation2 + $0x8] sm:$0xff]
    %v57 = vld [vmem:[#allocation2 + $0x10] sm:$0xff]
    %v58 = vld [vmem:[#allocation2 + $0x18] sm:$0xff]
    %v59 = vld [vmem:[#allocation2 + $0x20] sm:$0xff]
    %v60 = vld [vmem:[#allocation2 + $0x28] sm:$0xff]
    %v61 = vld [vmem:[#allocation2 + $0x30] sm:$0xff]
    %v62 = vld [vmem:[#allocation2 + $0x38] sm:$0xff]
    %v63 = vld [vmem:[#allocation2 + $0x40] sm:$0xff]
    %v64 = vld [vmem:[#allocation2 + $0x48] sm:$0xff]
    %v65 = vld [vmem:[#allocation2 + $0x50] sm:$0xff]
    %v66 = vld [vmem:[#allocation2 + $0x58] sm:$0xff]
    %v67 = vld [vmem:[#allocation2 + $0x60] sm:$0xff]
    %v68 = vld [vmem:[#allocation2 + $0x68] sm:$0xff]
    %v69 = vld [vmem:[#allocation2 + $0x70] sm:$0xff]
    %v70 = vld [vmem:[#allocation2 + $0x78] sm:$0xff]
    %v71 = vld [vmem:[#allocation5] sm:$0xf]
    %v72 = vld [vmem:[#allocation5 + $0x4] sm:$0xf]
    %v73 = vld [vmem:[#allocation5 + $0x8] sm:$0xf]
    %v74 = vld [vmem:[#allocation5 + $0xc] sm:$0xf]
    %v75 = vld [vmem:[#allocation5 + $0x10] sm:$0xf]
    %v76 = vld [vmem:[#allocation5 + $0x14] sm:$0xf]
    %v77 = vld [vmem:[#allocation5 + $0x18] sm:$0xf]
    %v78 = vld [vmem:[#allocation5 + $0x1c] sm:$0xf]
    %v79 = vld [vmem:[#allocation5 + $0x20] sm:$0xf]
    %v80 = vld [vmem:[#allocation5 + $0x24] sm:$0xf]
    %v81 = vld [vmem:[#allocation5 + $0x28] sm:$0xf]
    %v82 = vld [vmem:[#allocation5 + $0x2c] sm:$0xf]
    %v83 = vld [vmem:[#allocation5 + $0x30] sm:$0xf]
    %v84 = vld [vmem:[#allocation5 + $0x34] sm:$0xf]
    %v85 = vld [vmem:[#allocation5 + $0x38] sm:$0xf]
    %v86 = vld [vmem:[#allocation5 + $0x3c] sm:$0xf]
    %v87 = vld [vmem:[#allocation5 + $0x40] sm:$0xf]
    %v88 = vld [vmem:[#allocation5 + $0x44] sm:$0xf]
    %v89 = vld [vmem:[#allocation5 + $0x48] sm:$0xf]
    %v90 = vld [vmem:[#allocation5 + $0x4c] sm:$0xf]
    %v91 = vld [vmem:[#allocation5 + $0x50] sm:$0xf]
    %v92 = vld [vmem:[#allocation5 + $0x54] sm:$0xf]
    %v93 = vld [vmem:[#allocation5 + $0x58] sm:$0xf]
    %v94 = vld [vmem:[#allocation5 + $0x5c] sm:$0xf]
    %v95 = vld [vmem:[#allocation5 + $0x60] sm:$0xf]
    %v96 = vld [vmem:[#allocation5 + $0x64] sm:$0xf]
    %v97 = vld [vmem:[#allocation5 + $0x68] sm:$0xf]
    %v98 = vld [vmem:[#allocation5 + $0x6c] sm:$0xf]
    %v99 = vld [vmem:[#allocation5 + $0x70] sm:$0xf]
    %v100 = vld [vmem:[#allocation5 + $0x74] sm:$0xf]
    %v101 = vld [vmem:[#allocation5 + $0x78] sm:$0xf]
    %v102 = vld [vmem:[#allocation5 + $0x7c] sm:$0xf]
    %v103 = vld [vmem:[#allocation5 + $0x80] sm:$0xf]
    %v104 = vld [vmem:[#allocation5 + $0x84] sm:$0xf]
    %v105 = vld [vmem:[#allocation5 + $0x88] sm:$0xf]
    %v106 = vld [vmem:[#allocation5 + $0x8c] sm:$0xf]
    %v107 = vld [vmem:[#allocation5 + $0x90] sm:$0xf]
    %v108 = vld [vmem:[#allocation5 + $0x94] sm:$0xf]
    %v109 = vld [vmem:[#allocation5 + $0x98] sm:$0xf]
    %v110 = vld [vmem:[#allocation5 + $0x9c] sm:$0xf]
    %v111 = vld [vmem:[#allocation5 + $0xa0] sm:$0xf]
    %v112 = vld [vmem:[#allocation5 + $0xa4] sm:$0xf]
    %v113 = vld [vmem:[#allocation5 + $0xa8] sm:$0xf]
    %v114 = vld [vmem:[#allocation5 + $0xac] sm:$0xf]
    %v115 = vld [vmem:[#allocation5 + $0xb0] sm:$0xf]
    %v116 = vld [vmem:[#allocation5 + $0xb4] sm:$0xf]
    %v117 = vld [vmem:[#allocation5 + $0xb8] sm:$0xf]
    %v118 = vld [vmem:[#allocation5 + $0xbc] sm:$0xf]
    %v119 = vld [vmem:[#allocation5 + $0xc0] sm:$0xf]
    %v120 = vld [vmem:[#allocation5 + $0xc4] sm:$0xf]
    %v121 = vld [vmem:[#allocation5 + $0xc8] sm:$0xf]
    %v122 = vld [vmem:[#allocation5 + $0xcc] sm:$0xf]
    %v123 = vld [vmem:[#allocation5 + $0xd0] sm:$0xf]
    %v124 = vld [vmem:[#allocation5 + $0xd4] sm:$0xf]
    %v125 = vld [vmem:[#allocation5 + $0xd8] sm:$0xf]
    %v126 = vld [vmem:[#allocation5 + $0xdc] sm:$0xf]
    %v127 = vld [vmem:[#allocation5 + $0xe0] sm:$0xf]
    %v128 = vld [vmem:[#allocation5 + $0xe4] sm:$0xf]
    %v129 = vld [vmem:[#allocation5 + $0xe8] sm:$0xf]
    %v130 = vld [vmem:[#allocation5 + $0xec] sm:$0xf]
    %v131 = vld [vmem:[#allocation5 + $0xf0] sm:$0xf]
    %v132 = vld [vmem:[#allocation5 + $0xf4] sm:$0xf]
    %v133 = vld [vmem:[#allocation5 + $0xf8] sm:$0xf]
    %v134 = vld [vmem:[#allocation5 + $0xfc] sm:$0xf]
    %v135 = vld [vmem:[#allocation5 + $0x100] sm:$0xf]
    %v136 = vld [vmem:[#allocation5 + $0x104] sm:$0xf]
    %v137 = vld [vmem:[#allocation5 + $0x108] sm:$0xf]
    %v138 = vld [vmem:[#allocation5 + $0x10c] sm:$0xf]
    %v139 = vld [vmem:[#allocation5 + $0x110] sm:$0xf]
    %v140 = vld [vmem:[#allocation5 + $0x114] sm:$0xf]
    %v141 = vld [vmem:[#allocation5 + $0x118] sm:$0xf]
    %v142 = vld [vmem:[#allocation5 + $0x11c] sm:$0xf]
    %v143 = vld [vmem:[#allocation5 + $0x120] sm:$0xf]
    %v144 = vld [vmem:[#allocation5 + $0x124] sm:$0xf]
    %v145 = vld [vmem:[#allocation5 + $0x128] sm:$0xf]
    %v146 = vld [vmem:[#allocation5 + $0x12c] sm:$0xf]
    %v147 = vld [vmem:[#allocation5 + $0x130] sm:$0xf]
    %v148 = vld [vmem:[#allocation5 + $0x134] sm:$0xf]
    %v149 = vld [vmem:[#allocation5 + $0x138] sm:$0xf]
    %v150 = vld [vmem:[#allocation5 + $0x13c] sm:$0xf]
    %v151 = vld [vmem:[#allocation5 + $0x140] sm:$0xf]
    %v152 = vld [vmem:[#allocation5 + $0x144] sm:$0xf]
    %v153 = vld [vmem:[#allocation5 + $0x148] sm:$0xf]
    %v154 = vld [vmem:[#allocation5 + $0x14c] sm:$0xf]
    %v155 = vld [vmem:[#allocation5 + $0x150] sm:$0xf]
    %v156 = vld [vmem:[#allocation5 + $0x154] sm:$0xf]
    %v157 = vld [vmem:[#allocation5 + $0x158] sm:$0xf]
    %v158 = vld [vmem:[#allocation5 + $0x15c] sm:$0xf]
    %v159 = vld [vmem:[#allocation5 + $0x160] sm:$0xf]
    %v160 = vld [vmem:[#allocation5 + $0x164] sm:$0xf]
    %v161 = vld [vmem:[#allocation5 + $0x168] sm:$0xf]
    %v162 = vld [vmem:[#allocation5 + $0x16c] sm:$0xf]
    %v163 = vld [vmem:[#allocation5 + $0x170] sm:$0xf]
    %v164 = vld [vmem:[#allocation5 + $0x174] sm:$0xf]
    %v165 = vld [vmem:[#allocation5 + $0x178] sm:$0xf]
    %v166 = vld [vmem:[#allocation5 + $0x17c] sm:$0xf]
    %v167 = vld [vmem:[#allocation5 + $0x180] sm:$0xf]
    %v168 = vld [vmem:[#allocation5 + $0x184] sm:$0xf]
    %v169 = vld [vmem:[#allocation5 + $0x188] sm:$0xf]
    %v170 = vld [vmem:[#allocation5 + $0x18c] sm:$0xf]
    %v171 = vld [vmem:[#allocation5 + $0x190] sm:$0xf]
    %v172 = vld [vmem:[#allocation5 + $0x194] sm:$0xf]
    %v173 = vld [vmem:[#allocation5 + $0x198] sm:$0xf]
    %v174 = vld [vmem:[#allocation5 + $0x19c] sm:$0xf]
    %v175 = vld [vmem:[#allocation5 + $0x1a0] sm:$0xf]
    %v176 = vld [vmem:[#allocation5 + $0x1a4] sm:$0xf]
    %v177 = vld [vmem:[#allocation5 + $0x1a8] sm:$0xf]
    %v178 = vld [vmem:[#allocation5 + $0x1ac] sm:$0xf]
    %v179 = vld [vmem:[#allocation5 + $0x1b0] sm:$0xf]
    %v180 = vld [vmem:[#allocation5 + $0x1b4] sm:$0xf]
    %v181 = vld [vmem:[#allocation5 + $0x1b8] sm:$0xf]
    %v182 = vld [vmem:[#allocation5 + $0x1bc] sm:$0xf]
    %v183 = vld [vmem:[#allocation5 + $0x1c0] sm:$0xf]
    %v184 = vld [vmem:[#allocation5 + $0x1c4] sm:$0xf]
    %v185 = vld [vmem:[#allocation5 + $0x1c8] sm:$0xf]
    %v186 = vld [vmem:[#allocation5 + $0x1cc] sm:$0xf]
    %v187 = vld [vmem:[#allocation5 + $0x1d0] sm:$0xf]
    %v188 = vld [vmem:[#allocation5 + $0x1d4] sm:$0xf]
    %v189 = vld [vmem:[#allocation5 + $0x1d8] sm:$0xf]
    %v190 = vld [vmem:[#allocation5 + $0x1dc] sm:$0xf]
    %v191 = vld [vmem:[#allocation5 + $0x1e0] sm:$0xf]
    %v192 = vld [vmem:[#allocation5 + $0x1e4] sm:$0xf]
    %v193 = vld [vmem:[#allocation5 + $0x1e8] sm:$0xf]
    %v194 = vld [vmem:[#allocation5 + $0x1ec] sm:$0xf]
    %v195 = vld [vmem:[#allocation5 + $0x1f0] sm:$0xf]
    %v196 = vld [vmem:[#allocation5 + $0x1f4] sm:$0xf]
    %v197 = vld [vmem:[#allocation5 + $0x1f8] sm:$0xf]
    %v198 = vld [vmem:[#allocation5 + $0x1fc] sm:$0xf]
    %v199 = vpack.c.bf16 %v63, %v55
    %v200 = vpack.c.bf16 %v64, %v56
    %v201 = vpack.c.bf16 %v65, %v57
    %v202 = vpack.c.bf16 %v66, %v58
    %v203 = vpack.c.bf16 %v67, %v59
    %v204 = vpack.c.bf16 %v68, %v60
    %v205 = vpack.c.bf16 %v69, %v61
    %v206 = vpack.c.bf16 %v70, %v62
    %v207 = vld [vmem:[#allocation7] sm:$0x1]
    %v208 = vlaneseq
    %v209 = vshrl.u32 %v208, 7
    %v210 = vsub.s32 0, %v209
    %v211 = vrot.slane %v207, %v210
    %v340 = vunpack.c.l.b16 %v71
    %v341 = vunpack.c.l.b16 %v72
    %v342 = vunpack.c.l.b16 %v73
    %v343 = vunpack.c.l.b16 %v74
    %v344 = vunpack.c.l.b16 %v75
    %v345 = vunpack.c.l.b16 %v76
    %v346 = vunpack.c.l.b16 %v77
    %v347 = vunpack.c.l.b16 %v78
    %v348 = vunpack.c.l.b16 %v79
    %v349 = vunpack.c.l.b16 %v80
    %v350 = vunpack.c.l.b16 %v81
    %v351 = vunpack.c.l.b16 %v82
    %v352 = vunpack.c.l.b16 %v83
    %v353 = vunpack.c.l.b16 %v84
    %v354 = vunpack.c.l.b16 %v85
    %v355 = vunpack.c.l.b16 %v86
    %v356 = vunpack.c.l.b16 %v87
    %v357 = vunpack.c.l.b16 %v88
    %v358 = vunpack.c.l.b16 %v89
    %v359 = vunpack.c.l.b16 %v90
    %v360 = vunpack.c.l.b16 %v91
    %v361 = vunpack.c.l.b16 %v92
    %v362 = vunpack.c.l.b16 %v93
    %v363 = vunpack.c.l.b16 %v94
    %v364 = vunpack.c.l.b16 %v95
    %v365 = vunpack.c.l.b16 %v96
    %v366 = vunpack.c.l.b16 %v97
    %v367 = vunpack.c.l.b16 %v98
    %v368 = vunpack.c.l.b16 %v99
    %v369 = vunpack.c.l.b16 %v100
    %v370 = vunpack.c.l.b16 %v101
    %v371 = vunpack.c.l.b16 %v102
    %v372 = vunpack.c.l.b16 %v103
    %v373 = vunpack.c.l.b16 %v104
    %v374 = vunpack.c.l.b16 %v105
    %v375 = vunpack.c.l.b16 %v106
    %v376 = vunpack.c.l.b16 %v107
    %v377 = vunpack.c.l.b16 %v108
    %v378 = vunpack.c.l.b16 %v109
    %v379 = vunpack.c.l.b16 %v110
    %v380 = vunpack.c.l.b16 %v111
    %v381 = vunpack.c.l.b16 %v112
    %v382 = vunpack.c.l.b16 %v113
    %v383 = vunpack.c.l.b16 %v114
    %v384 = vunpack.c.l.b16 %v115
    %v385 = vunpack.c.l.b16 %v116
    %v386 = vunpack.c.l.b16 %v117
    %v387 = vunpack.c.l.b16 %v118
    %v388 = vunpack.c.l.b16 %v119
    %v389 = vunpack.c.l.b16 %v120
    %v390 = vunpack.c.l.b16 %v121
    %v391 = vunpack.c.l.b16 %v122
    %v392 = vunpack.c.l.b16 %v123
    %v393 = vunpack.c.l.b16 %v124
    %v394 = vunpack.c.l.b16 %v125
    %v395 = vunpack.c.l.b16 %v126
    %v396 = vunpack.c.l.b16 %v127
    %v397 = vunpack.c.l.b16 %v128
    %v398 = vunpack.c.l.b16 %v129
    %v399 = vunpack.c.l.b16 %v130
    %v400 = vunpack.c.l.b16 %v131
    %v401 = vunpack.c.l.b16 %v132
    %v402 = vunpack.c.l.b16 %v133
    %v403 = vunpack.c.l.b16 %v134
    %v404 = vunpack.c.l.b16 %v135
    %v405 = vunpack.c.l.b16 %v136
    %v406 = vunpack.c.l.b16 %v137
    %v407 = vunpack.c.l.b16 %v138
    %v408 = vunpack.c.l.b16 %v139
    %v409 = vunpack.c.l.b16 %v140
    %v410 = vunpack.c.l.b16 %v141
    %v411 = vunpack.c.l.b16 %v142
    %v412 = vunpack.c.l.b16 %v143
    %v413 = vunpack.c.l.b16 %v144
    %v414 = vunpack.c.l.b16 %v145
    %v415 = vunpack.c.l.b16 %v146
    %v416 = vunpack.c.l.b16 %v147
    %v417 = vunpack.c.l.b16 %v148
    %v418 = vunpack.c.l.b16 %v149
    %v419 = vunpack.c.l.b16 %v150
    %v420 = vunpack.c.l.b16 %v151
    %v421 = vunpack.c.l.b16 %v152
    %v422 = vunpack.c.l.b16 %v153
    %v423 = vunpack.c.l.b16 %v154
    %v424 = vunpack.c.l.b16 %v155
    %v425 = vunpack.c.l.b16 %v156
    %v426 = vunpack.c.l.b16 %v157
    %v427 = vunpack.c.l.b16 %v158
    %v428 = vunpack.c.l.b16 %v159
    %v429 = vunpack.c.l.b16 %v160
    %v430 = vunpack.c.l.b16 %v161
    %v431 = vunpack.c.l.b16 %v162
    %v432 = vunpack.c.l.b16 %v163
    %v433 = vunpack.c.l.b16 %v164
    %v434 = vunpack.c.l.b16 %v165
    %v435 = vunpack.c.l.b16 %v166
    %v436 = vunpack.c.l.b16 %v167
    %v437 = vunpack.c.l.b16 %v168
    %v438 = vunpack.c.l.b16 %v169
    %v439 = vunpack.c.l.b16 %v170
    %v440 = vunpack.c.l.b16 %v171
    %v441 = vunpack.c.l.b16 %v172
    %v442 = vunpack.c.l.b16 %v173
    %v443 = vunpack.c.l.b16 %v174
    %v444 = vunpack.c.l.b16 %v175
    %v445 = vunpack.c.l.b16 %v176
    %v446 = vunpack.c.l.b16 %v177
    %v447 = vunpack.c.l.b16 %v178
    %v448 = vunpack.c.l.b16 %v179
    %v449 = vunpack.c.l.b16 %v180
    %v450 = vunpack.c.l.b16 %v181
    %v451 = vunpack.c.l.b16 %v182
    %v452 = vunpack.c.l.b16 %v183
    %v453 = vunpack.c.l.b16 %v184
    %v454 = vunpack.c.l.b16 %v185
    %v455 = vunpack.c.l.b16 %v186
    %v456 = vunpack.c.l.b16 %v187
    %v457 = vunpack.c.l.b16 %v188
    %v458 = vunpack.c.l.b16 %v189
    %v459 = vunpack.c.l.b16 %v190
    %v460 = vunpack.c.l.b16 %v191
    %v461 = vunpack.c.l.b16 %v192
    %v462 = vunpack.c.l.b16 %v193
    %v463 = vunpack.c.l.b16 %v194
    %v464 = vunpack.c.l.b16 %v195
    %v465 = vunpack.c.l.b16 %v196
    %v466 = vunpack.c.l.b16 %v197
    %v467 = vunpack.c.l.b16 %v198
    %v468 = vpack.c.b16 %v341, %v340
    %v469 = vpack.c.b16 %v343, %v342
    %v470 = vpack.c.b16 %v345, %v344
    %v471 = vpack.c.b16 %v347, %v346
    %v472 = vpack.c.b16 %v349, %v348
    %v473 = vpack.c.b16 %v351, %v350
    %v474 = vpack.c.b16 %v353, %v352
    %v475 = vpack.c.b16 %v355, %v354
    %v476 = vpack.c.b16 %v357, %v356
    %v477 = vpack.c.b16 %v359, %v358
    %v478 = vpack.c.b16 %v361, %v360
    %v479 = vpack.c.b16 %v363, %v362
    %v480 = vpack.c.b16 %v365, %v364
    %v481 = vpack.c.b16 %v367, %v366
    %v482 = vpack.c.b16 %v369, %v368
    %v483 = vpack.c.b16 %v371, %v370
    %v484 = vpack.c.b16 %v373, %v372
    %v485 = vpack.c.b16 %v375, %v374
    %v486 = vpack.c.b16 %v377, %v376
    %v487 = vpack.c.b16 %v379, %v378
    %v488 = vpack.c.b16 %v381, %v380
    %v489 = vpack.c.b16 %v383, %v382
    %v490 = vpack.c.b16 %v385, %v384
    %v491 = vpack.c.b16 %v387, %v386
    %v492 = vpack.c.b16 %v389, %v388
    %v493 = vpack.c.b16 %v391, %v390
    %v494 = vpack.c.b16 %v393, %v392
    %v495 = vpack.c.b16 %v395, %v394
    %v496 = vpack.c.b16 %v397, %v396
    %v497 = vpack.c.b16 %v399, %v398
    %v498 = vpack.c.b16 %v401, %v400
    %v499 = vpack.c.b16 %v403, %v402
    %v500 = vpack.c.b16 %v405, %v404
    %v501 = vpack.c.b16 %v407, %v406
    %v502 = vpack.c.b16 %v409, %v408
    %v503 = vpack.c.b16 %v411, %v410
    %v504 = vpack.c.b16 %v413, %v412
    %v505 = vpack.c.b16 %v415, %v414
    %v506 = vpack.c.b16 %v417, %v416
    %v507 = vpack.c.b16 %v419, %v418
    %v508 = vpack.c.b16 %v421, %v420
    %v509 = vpack.c.b16 %v423, %v422
    %v510 = vpack.c.b16 %v425, %v424
    %v511 = vpack.c.b16 %v427, %v426
    %v512 = vpack.c.b16 %v429, %v428
    %v513 = vpack.c.b16 %v431, %v430
    %v514 = vpack.c.b16 %v433, %v432
    %v515 = vpack.c.b16 %v435, %v434
    %v516 = vpack.c.b16 %v437, %v436
    %v517 = vpack.c.b16 %v439, %v438
    %v518 = vpack.c.b16 %v441, %v440
    %v519 = vpack.c.b16 %v443, %v442
    %v520 = vpack.c.b16 %v445, %v444
    %v521 = vpack.c.b16 %v447, %v446
    %v522 = vpack.c.b16 %v449, %v448
    %v523 = vpack.c.b16 %v451, %v450
    %v524 = vpack.c.b16 %v453, %v452
    %v525 = vpack.c.b16 %v455, %v454
    %v526 = vpack.c.b16 %v457, %v456
    %v527 = vpack.c.b16 %v459, %v458
    %v528 = vpack.c.b16 %v461, %v460
    %v529 = vpack.c.b16 %v463, %v462
    %v530 = vpack.c.b16 %v465, %v464
    %v531 = vpack.c.b16 %v467, %v466
    %596 = vmatprep.subr.bf16.mxu0 0
    %597 = vmatpush1.bf16.msra.mxu0 %v468
    %598 = vmatprep.subr.bf16.mxu0 0
    %599 = vmatpush1.bf16.msra.mxu0 %v469
    %600 = vmatprep.subr.bf16.mxu0 0
    %601 = vmatpush1.bf16.msra.mxu0 %v470
    %602 = vmatprep.subr.bf16.mxu0 0
    %603 = vmatpush1.bf16.msra.mxu0 %v471
    %604 = vmatprep.subr.bf16.mxu0 0
    %605 = vmatpush1.bf16.msra.mxu0 %v472
    %606 = vmatprep.subr.bf16.mxu0 0
    %607 = vmatpush1.bf16.msra.mxu0 %v473
    %608 = vmatprep.subr.bf16.mxu0 0
    %609 = vmatpush1.bf16.msra.mxu0 %v474
    %610 = vmatprep.subr.bf16.mxu0 0
    %611 = vmatpush1.bf16.msra.mxu0 %v475
    %612 = vmatprep.subr.bf16.mxu0 0
    %613 = vmatpush1.bf16.msra.mxu0 %v476
    %614 = vmatprep.subr.bf16.mxu0 0
    %615 = vmatpush1.bf16.msra.mxu0 %v477
    %616 = vmatprep.subr.bf16.mxu0 0
    %617 = vmatpush1.bf16.msra.mxu0 %v478
    %618 = vmatprep.subr.bf16.mxu0 0
    %619 = vmatpush1.bf16.msra.mxu0 %v479
    %620 = vmatprep.subr.bf16.mxu0 0
    %621 = vmatpush1.bf16.msra.mxu0 %v480
    %622 = vmatprep.subr.bf16.mxu0 0
    %623 = vmatpush1.bf16.msra.mxu0 %v481
    %624 = vmatprep.subr.bf16.mxu0 0
    %625 = vmatpush1.bf16.msra.mxu0 %v482
    %626 = vmatprep.subr.bf16.mxu0 0
    %627 = vmatpush1.bf16.msra.mxu0 %v483
    %628 = vmatprep.mubr.bf16.mxu0 %v200
    %629 = vmatmul.mubr.bf16.gmra.mrb[0].mxu0 %v199
    %v630 = vpop.f32.mrb[0].mxu0
    %v631 = vadd.f32 %v211, %v630
    %v632 = vpop.f32.mrb[0].mxu0
    %v633 = vpop.f32.mrb[0].mxu0
    %v634 = vadd.f32 %v211, %v633
    %v635 = vpop.f32.mrb[0].mxu0
    %636 = vdwg.mxu0
    %637 = vmatprep.subr.bf16.mxu0 0
    %638 = vmatpush1.bf16.msra.mxu0 %v484
    %639 = vmatprep.subr.bf16.mxu0 0
    %640 = vmatpush1.bf16.msra.mxu0 %v485
    %641 = vmatprep.subr.bf16.mxu0 0
    %642 = vmatpush1.bf16.msra.mxu0 %v486
    %643 = vmatprep.subr.bf16.mxu0 0
    %644 = vmatpush1.bf16.msra.mxu0 %v487
    %645 = vmatprep.subr.bf16.mxu0 0
    %646 = vmatpush1.bf16.msra.mxu0 %v488
    %647 = vmatprep.subr.bf16.mxu0 0
    %648 = vmatpush1.bf16.msra.mxu0 %v489
    %649 = vmatprep.subr.bf16.mxu0 0
    %650 = vmatpush1.bf16.msra.mxu0 %v490
    %651 = vmatprep.subr.bf16.mxu0 0
    %652 = vmatpush1.bf16.msra.mxu0 %v491
    %653 = vmatprep.subr.bf16.mxu0 0
    %654 = vmatpush1.bf16.msra.mxu0 %v492
    %655 = vmatprep.subr.bf16.mxu0 0
    %656 = vmatpush1.bf16.msra.mxu0 %v493
    %657 = vmatprep.subr.bf16.mxu0 0
    %658 = vmatpush1.bf16.msra.mxu0 %v494
    %659 = vmatprep.subr.bf16.mxu0 0
    %660 = vmatpush1.bf16.msra.mxu0 %v495
    %661 = vmatprep.subr.bf16.mxu0 0
    %662 = vmatpush1.bf16.msra.mxu0 %v496
    %663 = vmatprep.subr.bf16.mxu0 0
    %664 = vmatpush1.bf16.msra.mxu0 %v497
    %665 = vmatprep.subr.bf16.mxu0 0
    %666 = vmatpush1.bf16.msra.mxu0 %v498
    %667 = vmatprep.subr.bf16.mxu0 0
    %668 = vmatpush1.bf16.msra.mxu0 %v499
    %669 = vmatprep.mubr.bf16.mxu0 %v202
    %670 = vmatmul.mubr.bf16.gmra.mrb[0].mxu0 %v201
    %v671 = vpop.f32.mrb[0].mxu0
    %v672 = vadd.f32 %v631, %v671
    %v673 = vpop.f32.mrb[0].mxu0
    %v674 = vpop.f32.mrb[0].mxu0
    %v675 = vadd.f32 %v634, %v674
    %v676 = vpop.f32.mrb[0].mxu0
    %677 = vdwg.mxu0
    %678 = vmatprep.subr.bf16.mxu0 0
    %679 = vmatpush1.bf16.msra.mxu0 %v500
    %680 = vmatprep.subr.bf16.mxu0 0
    %681 = vmatpush1.bf16.msra.mxu0 %v501
    %682 = vmatprep.subr.bf16.mxu0 0
    %683 = vmatpush1.bf16.msra.mxu0 %v502
    %684 = vmatprep.subr.bf16.mxu0 0
    %685 = vmatpush1.bf16.msra.mxu0 %v503
    %686 = vmatprep.subr.bf16.mxu0 0
    %687 = vmatpush1.bf16.msra.mxu0 %v504
    %688 = vmatprep.subr.bf16.mxu0 0
    %689 = vmatpush1.bf16.msra.mxu0 %v505
    %690 = vmatprep.subr.bf16.mxu0 0
    %691 = vmatpush1.bf16.msra.mxu0 %v506
    %692 = vmatprep.subr.bf16.mxu0 0
    %693 = vmatpush1.bf16.msra.mxu0 %v507
    %694 = vmatprep.subr.bf16.mxu0 0
    %695 = vmatpush1.bf16.msra.mxu0 %v508
    %696 = vmatprep.subr.bf16.mxu0 0
    %697 = vmatpush1.bf16.msra.mxu0 %v509
    %698 = vmatprep.subr.bf16.mxu0 0
    %699 = vmatpush1.bf16.msra.mxu0 %v510
    %700 = vmatprep.subr.bf16.mxu0 0
    %701 = vmatpush1.bf16.msra.mxu0 %v511
    %702 = vmatprep.subr.bf16.mxu0 0
    %703 = vmatpush1.bf16.msra.mxu0 %v512
    %704 = vmatprep.subr.bf16.mxu0 0
    %705 = vmatpush1.bf16.msra.mxu0 %v513
    %706 = vmatprep.subr.bf16.mxu0 0
    %707 = vmatpush1.bf16.msra.mxu0 %v514
    %708 = vmatprep.subr.bf16.mxu0 0
    %709 = vmatpush1.bf16.msra.mxu0 %v515
    %710 = vmatprep.mubr.bf16.mxu0 %v204
    %711 = vmatmul.mubr.bf16.gmra.mrb[0].mxu0 %v203
    %v712 = vpop.f32.mrb[0].mxu0
    %v713 = vadd.f32 %v672, %v712
    %v714 = vpop.f32.mrb[0].mxu0
    %v715 = vpop.f32.mrb[0].mxu0
    %v716 = vadd.f32 %v675, %v715
    %v717 = vpop.f32.mrb[0].mxu0
    %718 = vdwg.mxu0
    %719 = vmatprep.subr.bf16.mxu0 0
    %720 = vmatpush1.bf16.msra.mxu0 %v516
    %721 = vmatprep.subr.bf16.mxu0 0
    %722 = vmatpush1.bf16.msra.mxu0 %v517
    %723 = vmatprep.subr.bf16.mxu0 0
    %724 = vmatpush1.bf16.msra.mxu0 %v518
    %725 = vmatprep.subr.bf16.mxu0 0
    %726 = vmatpush1.bf16.msra.mxu0 %v519
    %727 = vmatprep.subr.bf16.mxu0 0
    %728 = vmatpush1.bf16.msra.mxu0 %v520
    %729 = vmatprep.subr.bf16.mxu0 0
    %730 = vmatpush1.bf16.msra.mxu0 %v521
    %731 = vmatprep.subr.bf16.mxu0 0
    %732 = vmatpush1.bf16.msra.mxu0 %v522
    %733 = vmatprep.subr.bf16.mxu0 0
    %734 = vmatpush1.bf16.msra.mxu0 %v523
    %735 = vmatprep.subr.bf16.mxu0 0
    %736 = vmatpush1.bf16.msra.mxu0 %v524
    %737 = vmatprep.subr.bf16.mxu0 0
    %738 = vmatpush1.bf16.msra.mxu0 %v525
    %739 = vmatprep.subr.bf16.mxu0 0
    %740 = vmatpush1.bf16.msra.mxu0 %v526
    %741 = vmatprep.subr.bf16.mxu0 0
    %742 = vmatpush1.bf16.msra.mxu0 %v527
    %743 = vmatprep.subr.bf16.mxu0 0
    %744 = vmatpush1.bf16.msra.mxu0 %v528
    %745 = vmatprep.subr.bf16.mxu0 0
    %746 = vmatpush1.bf16.msra.mxu0 %v529
    %747 = vmatprep.subr.bf16.mxu0 0
    %748 = vmatpush1.bf16.msra.mxu0 %v530
    %749 = vmatprep.subr.bf16.mxu0 0
    %750 = vmatpush1.bf16.msra.mxu0 %v531
    %751 = vmatprep.mubr.bf16.mxu0 %v206
    %752 = vmatmul.mubr.bf16.gmra.mrb[0].mxu0 %v205
    %v753 = vpop.f32.mrb[0].mxu0
    %v754 = vadd.f32 %v713, %v753
    %v755 = vpop.f32.mrb[0].mxu0
    %v756 = vpop.f32.mrb[0].mxu0
    %v757 = vadd.f32 %v716, %v756
    %v758 = vpop.f32.mrb[0].mxu0
    %759 = vdwg.mxu0
    %v760 = vmax.f32 %v754, 0.0
    %v761 = vmax.f32 %v757, 0.0
    %v762 = vld [vmem:[#allocation5 + $0x200] sm:$0xf]
    %v763 = vld [vmem:[#allocation5 + $0x204] sm:$0xf]
    %v764 = vld [vmem:[#allocation5 + $0x208] sm:$0xf]
    %v765 = vld [vmem:[#allocation5 + $0x20c] sm:$0xf]
    %v766 = vld [vmem:[#allocation5 + $0x210] sm:$0xf]
    %v767 = vld [vmem:[#allocation5 + $0x214] sm:$0xf]
    %v768 = vld [vmem:[#allocation5 + $0x218] sm:$0xf]
    %v769 = vld [vmem:[#allocation5 + $0x21c] sm:$0xf]
    %v770 = vld [vmem:[#allocation5 + $0x220] sm:$0xf]
    %v771 = vld [vmem:[#allocation5 + $0x224] sm:$0xf]
    %v772 = vld [vmem:[#allocation5 + $0x228] sm:$0xf]
    %v773 = vld [vmem:[#allocation5 + $0x22c] sm:$0xf]
    %v774 = vld [vmem:[#allocation5 + $0x230] sm:$0xf]
    %v775 = vld [vmem:[#allocation5 + $0x234] sm:$0xf]
    %v776 = vld [vmem:[#allocation5 + $0x238] sm:$0xf]
    %v777 = vld [vmem:[#allocation5 + $0x23c] sm:$0xf]
    %v778 = vpack.c.bf16 %v761, %v760
    %v779 = vld [vmem:[#allocation7 + $0x1] sm:$0x1]
    %v780 = vlaneseq
    %v781 = vshrl.u32 %v780, 7
    %v782 = vsub.s32 0, %v781
    %v783 = vrot.slane %v779, %v782
    %v800 = vunpack.c.l.b16 %v762
    %v801 = vunpack.c.l.b16 %v763
    %v802 = vunpack.c.l.b16 %v764
    %v803 = vunpack.c.l.b16 %v765
    %v804 = vunpack.c.l.b16 %v766
    %v805 = vunpack.c.l.b16 %v767
    %v806 = vunpack.c.l.b16 %v768
    %v807 = vunpack.c.l.b16 %v769
    %v808 = vunpack.c.l.b16 %v770
    %v809 = vunpack.c.l.b16 %v771
    %v810 = vunpack.c.l.b16 %v772
    %v811 = vunpack.c.l.b16 %v773
    %v812 = vunpack.c.l.b16 %v774
    %v813 = vunpack.c.l.b16 %v775
    %v814 = vunpack.c.l.b16 %v776
    %v815 = vunpack.c.l.b16 %v777
    %v816 = vpack.c.b16 %v801, %v800
    %v817 = vpack.c.b16 %v803, %v802
    %v818 = vpack.c.b16 %v805, %v804
    %v819 = vpack.c.b16 %v807, %v806
    %v820 = vpack.c.b16 %v809, %v808
    %v821 = vpack.c.b16 %v811, %v810
    %v822 = vpack.c.b16 %v813, %v812
    %v823 = vpack.c.b16 %v815, %v814
    %832 = vmatprep.subr.bf16.mxu0 0
    %833 = vmatpush1.bf16.msra.mxu0 %v816
    %834 = vmatprep.subr.bf16.mxu0 0
    %835 = vmatpush1.bf16.msra.mxu0 %v817
    %836 = vmatprep.subr.bf16.mxu0 0
    %837 = vmatpush1.bf16.msra.mxu0 %v818
    %838 = vmatprep.subr.bf16.mxu0 0
    %839 = vmatpush1.bf16.msra.mxu0 %v819
    %840 = vmatprep.subr.bf16.mxu0 0
    %841 = vmatpush1.bf16.msra.mxu0 %v820
    %842 = vmatprep.subr.bf16.mxu0 0
    %843 = vmatpush1.bf16.msra.mxu0 %v821
    %844 = vmatprep.subr.bf16.mxu0 0
    %845 = vmatpush1.bf16.msra.mxu0 %v822
    %846 = vmatprep.subr.bf16.mxu0 0
    %847 = vmatpush1.bf16.msra.mxu0 %v823
    %848 = vmatprep.subr.bf16.mxu0 0
    %849 = vmatpush1.bf16.msra.mxu0 0
    %850 = vmatprep.subr.bf16.mxu0 0
    %851 = vmatpush1.bf16.msra.mxu0 0
    %852 = vmatprep.subr.bf16.mxu0 0
    %853 = vmatpush1.bf16.msra.mxu0 0
    %854 = vmatprep.subr.bf16.mxu0 0
    %855 = vmatpush1.bf16.msra.mxu0 0
    %856 = vmatprep.subr.bf16.mxu0 0
    %857 = vmatpush1.bf16.msra.mxu0 0
    %858 = vmatprep.subr.bf16.mxu0 0
    %859 = vmatpush1.bf16.msra.mxu0 0
    %860 = vmatprep.subr.bf16.mxu0 0
    %861 = vmatpush1.bf16.msra.mxu0 0
    %862 = vmatprep.subr.bf16.mxu0 0
    %863 = vmatpush1.bf16.msra.mxu0 0
    %864 = vmatprep.mubr.bf16.mxu0 0
    %865 = vmatmul.mubr.bf16.gmra.mrb[0].mxu0 %v778
    %v866 = vpop.f32.mrb[0].mxu0
    %v867 = vadd.f32 %v783, %v866
    %v868 = vpop.f32.mrb[0].mxu0
    %v869 = vpop.f32.mrb[0].mxu0
    %v870 = vadd.f32 %v783, %v869
    %v871 = vpop.f32.mrb[0].mxu0
    %872 = vdwg.mxu0
    %v873 = vmax.f32 %v867, 0.0
    %v874 = vmax.f32 %v870, 0.0
    %v875 = vld [vmem:[#allocation7 + $0x2] sm:$0x1]
    %v876 = vlaneseq
    %v877 = vshrl.u32 %v876, 7
    %v878 = vsub.s32 0, %v877
    %v879 = vrot.slane %v875, %v878
    %v880 = vmul.f32 %v873, %v879
    %v881 = vmul.f32 %v874, %v879
    %v882 = vld [vmem:[#allocation7 + $0x3] sm:$0x1]
    %v883 = vlaneseq
    %v884 = vshrl.u32 %v883, 7
    %v885 = vsub.s32 0, %v884
    %v886 = vrot.slane %v882, %v885
    %v887 = vadd.f32 %v880, %v886
    %v888 = vadd.f32 %v881, %v886
    %v889 = vld [vmem:[#allocation5 + $0x240] sm:$0xf]
    %v890 = vld [vmem:[#allocation5 + $0x244] sm:$0xf]
    %v891 = vld [vmem:[#allocation5 + $0x248] sm:$0xf]
    %v892 = vld [vmem:[#allocation5 + $0x24c] sm:$0xf]
    %v893 = vld [vmem:[#allocation5 + $0x250] sm:$0xf]
    %v894 = vld [vmem:[#allocation5 + $0x254] sm:$0xf]
    %v895 = vld [vmem:[#allocation5 + $0x258] sm:$0xf]
    %v896 = vld [vmem:[#allocation5 + $0x25c] sm:$0xf]
    %v897 = vld [vmem:[#allocation5 + $0x260] sm:$0xf]
    %v898 = vld [vmem:[#allocation5 + $0x264] sm:$0xf]
    %v899 = vld [vmem:[#allocation5 + $0x268] sm:$0xf]
    %v900 = vld [vmem:[#allocation5 + $0x26c] sm:$0xf]
    %v901 = vld [vmem:[#allocation5 + $0x270] sm:$0xf]
    %v902 = vld [vmem:[#allocation5 + $0x274] sm:$0xf]
    %v903 = vld [vmem:[#allocation5 + $0x278] sm:$0xf]
    %v904 = vld [vmem:[#allocation5 + $0x27c] sm:$0xf]
    %v905 = vpack.c.bf16 %v888, %v887
    %v906 = vld [vmem:[#allocation7 + $0x4] sm:$0x1]
    %v907 = vlaneseq
    %v908 = vshrl.u32 %v907, 7
    %v909 = vsub.s32 0, %v908
    %v910 = vrot.slane %v906, %v909
    %v927 = vunpack.c.l.b16 %v889
    %v928 = vunpack.c.l.b16 %v890
    %v929 = vunpack.c.l.b16 %v891
    %v930 = vunpack.c.l.b16 %v892
    %v931 = vunpack.c.l.b16 %v893
    %v932 = vunpack.c.l.b16 %v894
    %v933 = vunpack.c.l.b16 %v895
    %v934 = vunpack.c.l.b16 %v896
    %v935 = vunpack.c.l.b16 %v897
    %v936 = vunpack.c.l.b16 %v898
    %v937 = vunpack.c.l.b16 %v899
    %v938 = vunpack.c.l.b16 %v900
    %v939 = vunpack.c.l.b16 %v901
    %v940 = vunpack.c.l.b16 %v902
    %v941 = vunpack.c.l.b16 %v903
    %v942 = vunpack.c.l.b16 %v904
    %v943 = vpack.c.b16 %v928, %v927
    %v944 = vpack.c.b16 %v930, %v929
    %v945 = vpack.c.b16 %v932, %v931
    %v946 = vpack.c.b16 %v934, %v933
    %v947 = vpack.c.b16 %v936, %v935
    %v948 = vpack.c.b16 %v938, %v937
    %v949 = vpack.c.b16 %v940, %v939
    %v950 = vpack.c.b16 %v942, %v941
    %959 = vmatprep.subr.bf16.mxu0 0
    %960 = vmatpush1.bf16.msra.mxu0 %v943
    %961 = vmatprep.subr.bf16.mxu0 0
    %962 = vmatpush1.bf16.msra.mxu0 %v944
    %963 = vmatprep.subr.bf16.mxu0 0
    %964 = vmatpush1.bf16.msra.mxu0 %v945
    %965 = vmatprep.subr.bf16.mxu0 0
    %966 = vmatpush1.bf16.msra.mxu0 %v946
    %967 = vmatprep.subr.bf16.mxu0 0
    %968 = vmatpush1.bf16.msra.mxu0 %v947
    %969 = vmatprep.subr.bf16.mxu0 0
    %970 = vmatpush1.bf16.msra.mxu0 %v948
    %971 = vmatprep.subr.bf16.mxu0 0
    %972 = vmatpush1.bf16.msra.mxu0 %v949
    %973 = vmatprep.subr.bf16.mxu0 0
    %974 = vmatpush1.bf16.msra.mxu0 %v950
    %975 = vmatprep.subr.bf16.mxu0 0
    %976 = vmatpush1.bf16.msra.mxu0 0
    %977 = vmatprep.subr.bf16.mxu0 0
    %978 = vmatpush1.bf16.msra.mxu0 0
    %979 = vmatprep.subr.bf16.mxu0 0
    %980 = vmatpush1.bf16.msra.mxu0 0
    %981 = vmatprep.subr.bf16.mxu0 0
    %982 = vmatpush1.bf16.msra.mxu0 0
    %983 = vmatprep.subr.bf16.mxu0 0
    %984 = vmatpush1.bf16.msra.mxu0 0
    %985 = vmatprep.subr.bf16.mxu0 0
    %986 = vmatpush1.bf16.msra.mxu0 0
    %987 = vmatprep.subr.bf16.mxu0 0
    %988 = vmatpush1.bf16.msra.mxu0 0
    %989 = vmatprep.subr.bf16.mxu0 0
    %990 = vmatpush1.bf16.msra.mxu0 0
    %991 = vmatprep.mubr.bf16.mxu0 0
    %992 = vmatmul.mubr.bf16.gmra.mrb[0].mxu0 %v905
    %v993 = vpop.f32.mrb[0].mxu0
    %v994 = vadd.f32 %v910, %v993
    %v995 = vpop.f32.mrb[0].mxu0
    %v996 = vpop.f32.mrb[0].mxu0
    %v997 = vadd.f32 %v910, %v996
    %v998 = vpop.f32.mrb[0].mxu0
    %999 = vdwg.mxu0
    %1000 = vst [vmem:[#allocation8] sm:$0xff] %v994
    %1001 = vst [vmem:[#allocation8 + $0x8] sm:$0xff] %v997
    // Predicated region
    $region26: #{tpu_custom_call.1} parent=1 // pred_check
      _
    $region27: #{tpu_custom_call.1} parent=1 // pred_check_branch
      %1003 = sbr.rel (0) target = $region29
    $region28: #{tpu_custom_call.1} parent=1 // pred_region
      %s1005 = ssub.s32 256, 256
      %1006 = vsyncadd [#allocation4], %s1005
      %s1007 = sshll.u32 [#allocation8], 4
      %s1008 = int_to_ptr.vmem [resolvable:$true] %s1007
      %1013 = dma.vmem_to_hbm [thread:$0]  %s1008, 256, %s3, [#allocation4], 128, 128, 8
    $region29: #{tpu_custom_call.1} parent=1 // pred_fallthru
      _
    // Predicated region
    $region30: #{tpu_custom_call.1} parent=1 // pred_check
      _
    $region31: #{tpu_custom_call.1} parent=1 // pred_check_branch
      %1015 = sbr.rel (0) target = $region33
    $region32: #{tpu_custom_call.1} parent=1 // pred_region
      %1016 = dma.done [#allocation4], 256
    $region33: #{tpu_custom_call.1} parent=1 // pred_fallthru
      _
    %1017 = vsyncpa [#allocation3], 1
    %1018 = vsyncpa [#allocation6], 1
    %1019 = vsyncpa [#allocation4], 1

</llo_original>
